<compile_context>
chip_gen: v5e
topology: v5e:2x2
jax: 0.10.0
libtpu: 0.0.40
codegen_flags: <defaults>
</compile_context>

<pallas_src>
import functools

import jax
import jax.numpy as jnp
from jax.experimental import pallas as pl
from jax.experimental.pallas import tpu as pltpu

_LANE = 128
_SUBLANE = 8


def _round_up(v, m):
    return ((v + m - 1) // m) * m


def _vmem_budget_bytes():
    """Usable per-kernel VMEM budget (leave headroom for Mosaic internal scratch)."""
    cap = 64 * 1024 * 1024  # conservative fallback (v7x per-TC)
    try:
        info = pltpu.get_tpu_info()
        cap = int(getattr(info, "vmem_capacity_bytes", cap)) or cap
    except Exception:
        pass
    return (cap * 3) // 4


# --------------------------------------------------------------------------- #
# Kernels
# --------------------------------------------------------------------------- #
def _resident_kernel(*refs, num_layers, compute_dtype):
    """All weights resident; one grid step = one batch tile through the full MLP.

    refs (L > 0):  x(TB,Hp), wh(L,Hp,Hp), bh(L,1,Hp), wf(1,Hp), bf(1,1 SMEM), o(TB,128)
    refs (L == 0): x(TB,Hp), wf(1,Hp), bf(1,1 SMEM), o(TB,128)
    """
    if num_layers > 0:
        x_ref, wh_ref, bh_ref, wf_ref, bf_ref, o_ref = refs
    else:
        x_ref, wf_ref, bf_ref, o_ref = refs

    h = x_ref[...]                                          # (TB, Hp) compute_dtype
    for l in range(num_layers):                             # static unroll
        y = jnp.dot(h, wh_ref[l], preferred_element_type=jnp.float32)
        h = jnp.maximum(y + bh_ref[l], 0.0).astype(compute_dtype)

    # Final Linear(H,1) as VPU multiply + lane reduce (no N=1 matmul).
    wf = wf_ref[...].astype(jnp.float32)                    # (1, Hp)
    logit = jnp.sum(h.astype(jnp.float32) * wf, axis=-1, keepdims=True) + bf_ref[0, 0]
    o_ref[...] = jnp.broadcast_to(logit, o_ref.shape).astype(o_ref.dtype)


def _streamed_kernel(x_ref, wh_ref, bh_ref, wf_ref, bf_ref, o_ref, h_ref, *,
                     compute_dtype):
    """One grid step = one hidden layer for one batch tile (weights streamed).

    x_ref : (TB, Hp)    compute_dtype, resident across the layer axis
    wh_ref: (1, Hp, Hp) compute_dtype, layer `l` weights (in x out), streamed
    bh_ref: (1, 1, Hp)  f32, layer `l` bias, streamed
    wf_ref: (1, Hp)     compute_dtype, final weight as a row, resident
    bf_ref: (1, 1)      f32 scalar in SMEM
    o_ref : (TB, 128)   lane-dense output slab
    h_ref : (TB, Hp)    compute_dtype activation carry (VMEM scratch)
    """
    layer = pl.program_id(1)

    @pl.when(layer == 0)
    def _init():
        h_ref[...] = x_ref[...]

    y = jnp.dot(h_ref[...], wh_ref[0], preferred_element_type=jnp.float32)
    h_ref[...] = jnp.maximum(y + bh_ref[0], 0.0).astype(compute_dtype)

    @pl.when(layer == pl.num_programs(1) - 1)
    def _final():
        wf = wf_ref[...].astype(jnp.float32)
        logit = (jnp.sum(h_ref[...].astype(jnp.float32) * wf, axis=-1, keepdims=True)
                 + bf_ref[0, 0])
        o_ref[...] = jnp.broadcast_to(logit, o_ref.shape).astype(o_ref.dtype)


# --------------------------------------------------------------------------- #
# Host-side packing + forward
# --------------------------------------------------------------------------- #
def pack_params(wh, bh, wf, bf, *, compute_dtype=jnp.bfloat16):
    """One-time weight pre-pack (pad + cast). Hoist out of the per-call hot path.

    wh: (L, H, H) hidden weights in (in, out) layout (y = x @ W + b)
    bh: (L, H); wf: (H, 1); bf: (1, 1)
    Zero-padding keeps semantics exact: padded input features are 0, padded weight
    rows/cols and biases are 0, so padded hidden units stay 0 through ReLU.
    """
    H = int(wf.shape[0])
    L = int(wh.shape[0])
    Hp = _round_up(max(H, 1), _LANE)
    if L > 0:
        wh_p = (jnp.zeros((L, Hp, Hp), compute_dtype)
                .at[:, :H, :H].set(wh.astype(compute_dtype)))
        bh_p = (jnp.zeros((L, 1, Hp), jnp.float32)
                .at[:, 0, :H].set(bh.astype(jnp.float32)))
    else:
        wh_p = jnp.zeros((0, Hp, Hp), compute_dtype)
        bh_p = jnp.zeros((0, 1, Hp), jnp.float32)
    wf_row = (jnp.zeros((1, Hp), compute_dtype)
              .at[0, :H].set(wf.reshape(-1).astype(compute_dtype)))
    bf_s = jnp.asarray(bf, jnp.float32).reshape(1, 1)
    return dict(wh=wh_p, bh=bh_p, wf=wf_row, bf=bf_s,
                H=H, L=L, Hp=Hp, compute_dtype=compute_dtype)


def language_detector_forward_packed(x, packed, *, force_streamed=False):
    """Forward with pre-packed weights. x: (B, H). Returns (B, 1) logits in x.dtype."""
    H, L, Hp = packed["H"], packed["L"], packed["Hp"]
    compute_dtype = packed["compute_dtype"]
    wbytes = jnp.dtype(compute_dtype).itemsize
    B = int(x.shape[0])
    assert int(x.shape[1]) == H, (x.shape, H)

    budget = _vmem_budget_bytes()
    wh_resident_bytes = L * Hp * Hp * wbytes + L * Hp * 4 + Hp * wbytes
    resident = (L == 0) or ((not force_streamed)
                            and wh_resident_bytes <= min(16 << 20, budget // 2))

    # ---- batch tile selection ----
    if B <= _LANE:
        TB = _round_up(max(B, 1), _SUBLANE)
    elif resident:
        # Weights are resident (no re-streaming cost), so prefer >=2 batch tiles
        # when B > 128 so both v7x TensorCores get work via the "parallel" axis.
        TB = 128 if B <= 256 else (256 if B <= 1024 else 512)
    else:
        # Streamed weights: bigger tiles raise flop/byte above the HBM roofline.
        TB = 512 if B >= 512 else (256 if B >= 256 else 128)

    def _est(tb):
        if resident:
            return (wh_resident_bytes
                    + 2 * tb * Hp * wbytes        # dbl-buffered x tile
                    + 2 * tb * _LANE * 4          # dbl-buffered output slab
                    + 2 * tb * Hp * 4)            # f32 intermediates headroom
        return (2 * Hp * Hp * wbytes              # dbl-buffered layer weights
                + 2 * tb * Hp * wbytes            # dbl-buffered x tile
                + tb * Hp * wbytes                # activation-carry scratch
                + 2 * Hp * 4                      # layer bias
                + Hp * wbytes                     # final weight row
                + 2 * tb * _LANE * 4)             # output slab

    while TB > 128 and _est(TB) > budget:
        TB //= 2
    # TODO(synk): if the streamed (Hp,Hp) weight block alone exceeds the budget
    # (Hp >~ 3.5K bf16 on v7x), it needs K/N tiling; only per-layer streaming here.

    Bp = _round_up(max(B, 1), TB)
    GB = Bp // TB
    vmem_est = _est(TB)
    vmem_limit = None
    if vmem_est > 32 * 1024 * 1024:
        vmem_limit = min(int(vmem_est * 5 // 4), budget)

    # Only per-call host work: pad the input tile (weights are pre-packed).
    x_pad = jnp.zeros((Bp, Hp), compute_dtype).at[:B, :H].set(x.astype(compute_dtype))

    if resident:
        kernel = functools.partial(_resident_kernel, num_layers=L,
                                   compute_dtype=compute_dtype)
        in_specs = [pl.BlockSpec((TB, Hp), lambda b: (b, 0))]            # x
        args = [x_pad]
        if L > 0:
            in_specs += [pl.BlockSpec((L, Hp, Hp), lambda b: (0, 0, 0)),  # wh resident
                         pl.BlockSpec((L, 1, Hp), lambda b: (0, 0, 0))]   # bh resident
            args += [packed["wh"], packed["bh"]]
        in_specs += [pl.BlockSpec((1, Hp), lambda b: (0, 0)),             # wf row
                     pl.BlockSpec(memory_space=pltpu.MemorySpace.SMEM)]   # bf scalar
        args += [packed["wf"], packed["bf"]]

        out_pad = pl.pallas_call(
            kernel,
            out_shape=jax.ShapeDtypeStruct((Bp, _LANE), x.dtype),
            grid_spec=pltpu.PrefetchScalarGridSpec(
                num_scalar_prefetch=0,
                grid=(GB,),
                in_specs=in_specs,
                out_specs=pl.BlockSpec((TB, _LANE), lambda b: (b, 0)),
            ),
            compiler_params=pltpu.CompilerParams(
                dimension_semantics=("parallel",),
                vmem_limit_bytes=vmem_limit,
            ),
        )(*args)
    else:
        kernel = functools.partial(_streamed_kernel, compute_dtype=compute_dtype)
        out_pad = pl.pallas_call(
            kernel,
            out_shape=jax.ShapeDtypeStruct((Bp, _LANE), x.dtype),
            grid_spec=pltpu.PrefetchScalarGridSpec(
                num_scalar_prefetch=0,
                grid=(GB, L),
                in_specs=[
                    pl.BlockSpec((TB, Hp), lambda b, l: (b, 0)),          # x (resident over l)
                    pl.BlockSpec((1, Hp, Hp), lambda b, l: (l, 0, 0)),    # wh streamed
                    pl.BlockSpec((1, 1, Hp), lambda b, l: (l, 0, 0)),     # bh streamed
                    pl.BlockSpec((1, Hp), lambda b, l: (0, 0)),           # wf row
                    pl.BlockSpec(memory_space=pltpu.MemorySpace.SMEM),    # bf scalar
                ],
                out_specs=pl.BlockSpec((TB, _LANE), lambda b, l: (b, 0)),
                scratch_shapes=[pltpu.VMEM((TB, Hp), compute_dtype)],
            ),
            compiler_params=pltpu.CompilerParams(
                dimension_semantics=("parallel", "arbitrary"),
                vmem_limit_bytes=vmem_limit,
            ),
        )(x_pad, packed["wh"], packed["bh"], packed["wf"], packed["bf"])

    return out_pad[:B, :1].astype(x.dtype)


def language_detector_forward(x, wh, bh, wf, bf, *, compute_dtype=jnp.bfloat16,
                              force_streamed=False):
    """Convenience wrapper: packs per call. For hot paths, call pack_params() once
    and use language_detector_forward_packed()."""
    packed = pack_params(wh, bh, wf, bf, compute_dtype=compute_dtype)
    return language_detector_forward_packed(x, packed, force_streamed=force_streamed)


# --------------------------------------------------------------------------- #
# Reference + init
# --------------------------------------------------------------------------- #
def init_params(key, num_layers, hidden_size, dtype=jnp.float32):
    """PyTorch-Linear-style init (U(-1/sqrt(in), 1/sqrt(in))); weights in (in, out)."""
    keys = jax.random.split(key, 2 * num_layers + 2)
    bound = 1.0 / (hidden_size ** 0.5)
    wh, bh = [], []
    for l in range(num_layers):
        wh.append(jax.random.uniform(keys[2 * l], (hidden_size, hidden_size),
                                     minval=-bound, maxval=bound, dtype=dtype))
        bh.append(jax.random.uniform(keys[2 * l + 1], (hidden_size,),
                                     minval=-bound, maxval=bound, dtype=dtype))
    wh = (jnp.stack(wh, 0) if num_layers > 0
          else jnp.zeros((0, hidden_size, hidden_size), dtype))
    bh = (jnp.stack(bh, 0) if num_layers > 0
          else jnp.zeros((0, hidden_size), dtype))
    wf = jax.random.uniform(keys[-2], (hidden_size, 1),
                            minval=-bound, maxval=bound, dtype=dtype)
    bf = jax.random.uniform(keys[-1], (1, 1),
                            minval=-bound, maxval=bound, dtype=dtype)
    return wh, bh, wf, bf


def reference_forward(x, wh, bh, wf, bf, *, compute_dtype=jnp.bfloat16):
    """Pure-JAX reference using the same operand-dtype convention as the kernels.
    With compute_dtype=float32 this is exact eval-mode PyTorch semantics."""
    h = x.astype(compute_dtype)
    for l in range(wh.shape[0]):
        y = jnp.dot(h, wh[l].astype(compute_dtype),
                    preferred_element_type=jnp.float32)
        h = jnp.maximum(y + bh[l][None, :].astype(jnp.float32), 0.0).astype(compute_dtype)
    wf_row = wf.reshape(1, -1).astype(compute_dtype).astype(jnp.float32)
    out = (jnp.sum(h.astype(jnp.float32) * wf_row, axis=-1, keepdims=True)
           + bf.astype(jnp.float32).reshape(()))
    return out.astype(x.dtype)


if __name__ == "__main__":
    num_layers = 2
    hidden_size = 32
    batch = 8

    key = jax.random.PRNGKey(0)
    kx, kp = jax.random.split(key)
    x = jax.random.normal(kx, (batch, hidden_size), dtype=jnp.float32)
    wh, bh, wf, bf = init_params(kp, num_layers, hidden_size)

    # Resident path, bf16 MXU operands (default).
    packed_bf16 = pack_params(wh, bh, wf, bf, compute_dtype=jnp.bfloat16)
    out_bf16 = jax.block_until_ready(language_detector_forward_packed(x, packed_bf16))
    ref_bf16 = reference_forward(x, wh, bh, wf, bf, compute_dtype=jnp.bfloat16)
    assert out_bf16.shape == (batch, 1), out_bf16.shape
    assert jnp.allclose(out_bf16, ref_bf16, atol=1e-2, rtol=1e-2), (out_bf16, ref_bf16)

    # Resident path, f32 (exact parity with the f32 PyTorch module semantics).
    packed_f32 = pack_params(wh, bh, wf, bf, compute_dtype=jnp.float32)
    out_f32 = jax.block_until_ready(language_detector_forward_packed(x, packed_f32))
    ref_f32 = reference_forward(x, wh, bh, wf, bf, compute_dtype=jnp.float32)
    assert jnp.allclose(out_f32, ref_f32, atol=1e-5, rtol=1e-5), (out_f32, ref_f32)

    # Streamed (per-layer weight DMA) path, exercised explicitly.
    out_st = jax.block_until_ready(
        language_detector_forward_packed(x, packed_bf16, force_streamed=True))
    assert jnp.allclose(out_st, ref_bf16, atol=1e-2, rtol=1e-2), (out_st, ref_bf16)
    out_st32 = jax.block_until_ready(
        language_detector_forward_packed(x, packed_f32, force_streamed=True))
    assert jnp.allclose(out_st32, ref_f32, atol=1e-5, rtol=1e-5), (out_st32, ref_f32)

    # num_layers == 0 edge case (final Linear only, no dummy weight block).
    wh0, bh0, wf0, bf0 = init_params(kp, 0, hidden_size)
    out0 = jax.block_until_ready(
        language_detector_forward(x, wh0, bh0, wf0, bf0, compute_dtype=jnp.float32))
    ref0 = reference_forward(x, wh0, bh0, wf0, bf0, compute_dtype=jnp.float32)
    assert jnp.allclose(out0, ref0, atol=1e-5, rtol=1e-5), (out0, ref0)

    print("KERNEL_OK")
</pallas_src>

<mosaic_0001>
module attributes {stable_mosaic.version = 11 : i64} {
  func.func @_resident_kernel(%arg0: i32, %arg1: memref<8x128xbf16, #tpu.memory_space<vmem>>, %arg2: memref<2x128x128xbf16, #tpu.memory_space<vmem>>, %arg3: memref<2x1x128xf32, #tpu.memory_space<vmem>>, %arg4: memref<1x128xbf16, #tpu.memory_space<vmem>>, %arg5: memref<1x1xf32, #tpu.memory_space<smem>>, %arg6: memref<8x128xf32, #tpu.memory_space<vmem>>) attributes {dimension_semantics = [#tpu.dimension_semantics<parallel>], iteration_bounds = array<i64: 1>, scalar_prefetch = 0 : i64, scratch_operands = 0 : i64, tpu.core_type = #tpu.core_type<tc>, window_params = [{transform_indices = @transform_0, window_bounds = array<i64: 8, 128>}, {pipeline_mode = #tpu.pipeline_mode<synchronous>, transform_indices = @transform_1, window_bounds = array<i64: 2, 128, 128>}, {pipeline_mode = #tpu.pipeline_mode<synchronous>, transform_indices = @transform_2, window_bounds = array<i64: 2, 1, 128>}, {pipeline_mode = #tpu.pipeline_mode<synchronous>, transform_indices = @transform_3, window_bounds = array<i64: 1, 128>}, {transform_indices = @transform_4, window_bounds = array<i64: 1, 1>}, {transform_indices = @transform_5, window_bounds = array<i64: 8, 128>}]} {
    %c0 = arith.constant 0 : index
    %c0_0 = arith.constant 0 : index
    %0 = vector.load %arg1[%c0, %c0_0] : memref<8x128xbf16, #tpu.memory_space<vmem>>, vector<8x128xbf16>
    %c0_1 = arith.constant 0 : index
    %c0_2 = arith.constant 0 : index
    %c0_3 = arith.constant 0 : index
    %1 = vector.load %arg2[%c0_1, %c0_2, %c0_3] : memref<2x128x128xbf16, #tpu.memory_space<vmem>>, vector<1x128x128xbf16>
    %2 = vector.shape_cast %1 : vector<1x128x128xbf16> to vector<128x128xbf16>
    %cst = arith.constant dense<0.000000e+00> : vector<8x128xf32>
    %3 = tpu.matmul %0, %2, %cst {dimension_numbers = #tpu.dot_dimension_numbers<[1], [0], [0], [1], [0, 0, 1, 1], [], []>} : vector<8x128xbf16>, vector<128x128xbf16>, vector<8x128xf32> -> vector<8x128xf32>
    %c0_4 = arith.constant 0 : index
    %c0_5 = arith.constant 0 : index
    %c0_6 = arith.constant 0 : index
    %4 = vector.load %arg3[%c0_4, %c0_5, %c0_6] : memref<2x1x128xf32, #tpu.memory_space<vmem>>, vector<1x1x128xf32>
    %5 = vector.shape_cast %4 : vector<1x1x128xf32> to vector<1x128xf32>
    %6 = vector.broadcast %5 : vector<1x128xf32> to vector<8x128xf32>
    %7 = arith.addf %3, %6 : vector<8x128xf32>
    %cst_7 = arith.constant 0.000000e+00 : f32
    %8 = vector.broadcast %cst_7 : f32 to vector<8x128xf32>
    %9 = arith.maximumf %7, %8 : vector<8x128xf32>
    %10 = arith.truncf %9 : vector<8x128xf32> to vector<8x128xbf16>
    %c1 = arith.constant 1 : index
    %c0_8 = arith.constant 0 : index
    %c0_9 = arith.constant 0 : index
    %11 = vector.load %arg2[%c1, %c0_8, %c0_9] : memref<2x128x128xbf16, #tpu.memory_space<vmem>>, vector<1x128x128xbf16>
    %12 = vector.shape_cast %11 : vector<1x128x128xbf16> to vector<128x128xbf16>
    %cst_10 = arith.constant dense<0.000000e+00> : vector<8x128xf32>
    %13 = tpu.matmul %10, %12, %cst_10 {dimension_numbers = #tpu.dot_dimension_numbers<[1], [0], [0], [1], [0, 0, 1, 1], [], []>} : vector<8x128xbf16>, vector<128x128xbf16>, vector<8x128xf32> -> vector<8x128xf32>
    %c1_11 = arith.constant 1 : index
    %c0_12 = arith.constant 0 : index
    %c0_13 = arith.constant 0 : index
    %14 = vector.load %arg3[%c1_11, %c0_12, %c0_13] : memref<2x1x128xf32, #tpu.memory_space<vmem>>, vector<1x1x128xf32>
    %15 = vector.shape_cast %14 : vector<1x1x128xf32> to vector<1x128xf32>
    %16 = vector.broadcast %15 : vector<1x128xf32> to vector<8x128xf32>
    %17 = arith.addf %13, %16 : vector<8x128xf32>
    %cst_14 = arith.constant 0.000000e+00 : f32
    %18 = vector.broadcast %cst_14 : f32 to vector<8x128xf32>
    %19 = arith.maximumf %17, %18 : vector<8x128xf32>
    %20 = arith.truncf %19 : vector<8x128xf32> to vector<8x128xbf16>
    %c0_15 = arith.constant 0 : index
    %c0_16 = arith.constant 0 : index
    %21 = vector.load %arg4[%c0_15, %c0_16] : memref<1x128xbf16, #tpu.memory_space<vmem>>, vector<1x128xbf16>
    %22 = arith.extf %21 : vector<1x128xbf16> to vector<1x128xf32>
    %23 = arith.extf %20 : vector<8x128xbf16> to vector<8x128xf32>
    %24 = vector.broadcast %22 : vector<1x128xf32> to vector<8x128xf32>
    %25 = arith.mulf %23, %24 : vector<8x128xf32>
    %cst_17 = arith.constant dense<0.000000e+00> : vector<8xf32>
    %26 = vector.multi_reduction <add>, %25, %cst_17 [1] : vector<8x128xf32> to vector<8xf32>
    %27 = vector.shape_cast %26 : vector<8xf32> to vector<8x1xf32>
    %c0_18 = arith.constant 0 : index
    %c0_19 = arith.constant 0 : index
    %28 = memref.load %arg5[%c0_18, %c0_19] : memref<1x1xf32, #tpu.memory_space<smem>>
    %29 = vector.broadcast %28 : f32 to vector<8x1xf32>
    %30 = arith.addf %27, %29 : vector<8x1xf32>
    %31 = vector.shape_cast %30 : vector<8x1xf32> to vector<8x1xf32>
    %32 = vector.broadcast %31 : vector<8x1xf32> to vector<8x128xf32>
    %c0_20 = arith.constant 0 : index
    %c0_21 = arith.constant 0 : index
    %33 = vector.load %arg6[%c0_20, %c0_21] : memref<8x128xf32, #tpu.memory_space<vmem>>, vector<8x128xf32>
    tpu.vector_store %arg6[%c0_20, %c0_21], %32 {strides = array<i32>} : memref<8x128xf32, #tpu.memory_space<vmem>>, vector<8x128xf32>,
    return
  }
  func.func @transform_0(%arg0: i32) -> (i32, i32) {
    %c0_i32 = arith.constant 0 : i32
    %c0_i32_0 = arith.constant 0 : i32
    return %arg0, %c0_i32 : i32, i32
  }
  func.func @transform_1(%arg0: i32) -> (i32, i32, i32) {
    %c0_i32 = arith.constant 0 : i32
    %c0_i32_0 = arith.constant 0 : i32
    %c0_i32_1 = arith.constant 0 : i32
    %c0_i32_2 = arith.constant 0 : i32
    return %c0_i32, %c0_i32_0, %c0_i32_1 : i32, i32, i32
  }
  func.func @transform_2(%arg0: i32) -> (i32, i32, i32) {
    %c0_i32 = arith.constant 0 : i32
    %c0_i32_0 = arith.constant 0 : i32
    %c0_i32_1 = arith.constant 0 : i32
    %c0_i32_2 = arith.constant 0 : i32
    return %c0_i32, %c0_i32_0, %c0_i32_1 : i32, i32, i32
  }
  func.func @transform_3(%arg0: i32) -> (i32, i32) {
    %c0_i32 = arith.constant 0 : i32
    %c0_i32_0 = arith.constant 0 : i32
    %c0_i32_1 = arith.constant 0 : i32
    return %c0_i32, %c0_i32_0 : i32, i32
  }
  func.func @transform_4(%arg0: i32) -> (i32, i32) {
    %c0_i32 = arith.constant 0 : i32
    %c0_i32_0 = arith.constant 0 : i32
    %c0_i32_1 = arith.constant 0 : i32
    return %c0_i32, %c0_i32_0 : i32, i32
  }
  func.func @transform_5(%arg0: i32) -> (i32, i32) {
    %c0_i32 = arith.constant 0 : i32
    %c0_i32_0 = arith.constant 0 : i32
    return %arg0, %c0_i32 : i32, i32
  }
}

</mosaic_0001>

<llo_original>
// kernel: tpu_custom_call.1
$region0: #{tpu_custom_call.1}
  #allocation0 [shape = 'u32[]', space=smem, size = 0x4, offset = 0x4, fixed_abs, tag = 'smem constant byte address 0x4 - core index']
  #allocation1 [shape = 'u32[72,128]{1,0:T(1,128)}', space=vmem, size = 0x9000, scoped, tag = 'internal scratch']
  #allocation2 [shape = 'f32[1,1]{1,0:T(1,128)S(6)}', space=smem, size = 0x200, scoped, tag = 'scoped memory for tpu_custom_call.1']
  %s0 = inlined_call_operand.hbm [shape: bf16[8,128], index: 0, kind: input, shape index: {}]
  %s1 = inlined_call_operand.hbm [shape: bf16[2,128,128], index: 1, kind: input, shape index: {}]
  %s2 = inlined_call_operand.vmem [shape: f32[2,1,128], index: 2, kind: input, shape index: {}]
  %s3 = inlined_call_operand.vmem [shape: bf16[1,128], index: 3, kind: input, shape index: {}]
  %s4 = inlined_call_operand.<no memory space> [shape: f32[1,1], index: 4, kind: input, shape index: {}]
  %s5 = inlined_call_operand.hbm [shape: f32[8,128], index: 5, kind: output, shape index: {}]
  %s6 = sld [smem:[#allocation0]]
  $region38: #{tpu_custom_call.1} parent=0
    _
  %s8 = ssub.s32 1, %s6
  %s9 = scalar_select 0, %s8, %s6
  %10 = sst [smem:[#allocation2]] %s4
  $region1: #{tpu_custom_call.1} parent=0
    #allocation3 [shape = 'u8[2048]{0}', space=vmem, size = 0x800, scoped, tag = 'input window, operand 0, single buffered']
    #allocation4 [shape = 's32[1]{0}', space=sflag, size = 0x4, scoped, tag = 'scoped memory for tpu_custom_call.1']
    #allocation5 [shape = 's32[1]{0}', space=sflag, size = 0x4, scoped, tag = 'scoped memory for tpu_custom_call.1']
    #allocation6 [shape = 'u8[65536]{0}', space=vmem, size = 0x10000, scoped, tag = 'input window, operand 1, single buffered']
    #allocation7 [shape = 's32[1]{0}', space=sflag, size = 0x4, scoped, tag = 'scoped memory for tpu_custom_call.1']
    #allocation8 [shape = 'u8[4096]{0}', space=vmem, size = 0x1000, scoped, tag = 'output window, operand 0, single buffered']
    %11 = vsyncpa [#allocation4], 0
    %12 = vsyncpa [#allocation7], 0
    %13 = vsyncpa [#allocation5], 0
    // Predicated region
    $region2: #{tpu_custom_call.1} parent=1 // pred_check
      _
    $region3: #{tpu_custom_call.1} parent=1 // pred_check_branch
      %15 = sbr.rel (0) target = $region5
    $region4: #{tpu_custom_call.1} parent=1 // pred_region
      %17 = vsyncadd [#allocation4], 0
      %s19 = sshll.u32 %s0, 4
      %s20 = int_to_ptr.hbm [resolvable:$true] %s19
      %s21 = sshll.u32 [#allocation3], 4
      %s22 = int_to_ptr.vmem [resolvable:$true] %s21
      %24 = dma.hbm_to_vmem [thread:$0]  %s20, 64, %s22, [#allocation4]
    $region5: #{tpu_custom_call.1} parent=1 // pred_fallthru
      _
    // Predicated region
    $region6: #{tpu_custom_call.1} parent=1 // pred_check
      _
    $region7: #{tpu_custom_call.1} parent=1 // pred_check_branch
      %26 = sbr.rel (0) target = $region9
    $region8: #{tpu_custom_call.1} parent=1 // pred_region
      %28 = vsyncadd [#allocation7], 0
      %s29 = sshll.u32 %s1, 4
      %s30 = int_to_ptr.hbm [resolvable:$true] %s29
      %s31 = sshll.u32 [#allocation6], 4
      %s32 = int_to_ptr.vmem [resolvable:$true] %s31
      %37 = dma.hbm_to_vmem [thread:$0]  %s30, 2048, %s32, [#allocation7], 64, 64, 4
    $region9: #{tpu_custom_call.1} parent=1 // pred_fallthru
      _
    // Predicated region
    $region10: #{tpu_custom_call.1} parent=1 // pred_check
      _
    $region11: #{tpu_custom_call.1} parent=1 // pred_check_branch
      %39 = sbr.rel (0) target = $region13
    $region12: #{tpu_custom_call.1} parent=1 // pred_region
      _
    $region13: #{tpu_custom_call.1} parent=1 // pred_fallthru
      _
    // Predicated region
    $region14: #{tpu_custom_call.1} parent=1 // pred_check
      _
    $region15: #{tpu_custom_call.1} parent=1 // pred_check_branch
      %41 = sbr.rel (0) target = $region17
    $region16: #{tpu_custom_call.1} parent=1 // pred_region
      _
    $region17: #{tpu_custom_call.1} parent=1 // pred_fallthru
      _
    // Predicated region
    $region18: #{tpu_custom_call.1} parent=1 // pred_check
      _
    $region19: #{tpu_custom_call.1} parent=1 // pred_check_branch
      %43 = sbr.rel (0) target = $region21
    $region20: #{tpu_custom_call.1} parent=1 // pred_region
      _
    $region21: #{tpu_custom_call.1} parent=1 // pred_fallthru
      _
    // Predicated region
    $region22: #{tpu_custom_call.1} parent=1 // pred_check
      _
    $region23: #{tpu_custom_call.1} parent=1 // pred_check_branch
      %45 = sbr.rel (0) target = $region25
    $region24: #{tpu_custom_call.1} parent=1 // pred_region
      %47 = dma.done [#allocation4], 64
    $region25: #{tpu_custom_call.1} parent=1 // pred_fallthru
      _
    // Predicated region
    $region26: #{tpu_custom_call.1} parent=1 // pred_check
      _
    $region27: #{tpu_custom_call.1} parent=1 // pred_check_branch
      %49 = sbr.rel (0) target = $region29
    $region28: #{tpu_custom_call.1} parent=1 // pred_region
      %51 = dma.done [#allocation7], 2048
    $region29: #{tpu_custom_call.1} parent=1 // pred_fallthru
      _
    %v52 = vld [vmem:[#allocation3] sm:$0xf]
    %v53 = vld [vmem:[#allocation6] sm:$0xf]
    %v54 = vld [vmem:[#allocation6 + $0x4] sm:$0xf]
    %v55 = vld [vmem:[#allocation6 + $0x8] sm:$0xf]
    %v56 = vld [vmem:[#allocation6 + $0xc] sm:$0xf]
    %v57 = vld [vmem:[#allocation6 + $0x10] sm:$0xf]
    %v58 = vld [vmem:[#allocation6 + $0x14] sm:$0xf]
    %v59 = vld [vmem:[#allocation6 + $0x18] sm:$0xf]
    %v60 = vld [vmem:[#allocation6 + $0x1c] sm:$0xf]
    %v61 = vld [vmem:[#allocation6 + $0x20] sm:$0xf]
    %v62 = vld [vmem:[#allocation6 + $0x24] sm:$0xf]
    %v63 = vld [vmem:[#allocation6 + $0x28] sm:$0xf]
    %v64 = vld [vmem:[#allocation6 + $0x2c] sm:$0xf]
    %v65 = vld [vmem:[#allocation6 + $0x30] sm:$0xf]
    %v66 = vld [vmem:[#allocation6 + $0x34] sm:$0xf]
    %v67 = vld [vmem:[#allocation6 + $0x38] sm:$0xf]
    %v68 = vld [vmem:[#allocation6 + $0x3c] sm:$0xf]
    %v69 = vld [vmem:[%s2] sm:$0x1]
    %v71 = vperm.slane %v69, 0
    %v89 = vunpack.c.l.b16 %v53
    %v90 = vunpack.c.l.b16 %v54
    %v91 = vunpack.c.l.b16 %v55
    %v92 = vunpack.c.l.b16 %v56
    %v93 = vunpack.c.l.b16 %v57
    %v94 = vunpack.c.l.b16 %v58
    %v95 = vunpack.c.l.b16 %v59
    %v96 = vunpack.c.l.b16 %v60
    %v97 = vunpack.c.l.b16 %v61
    %v98 = vunpack.c.l.b16 %v62
    %v99 = vunpack.c.l.b16 %v63
    %v100 = vunpack.c.l.b16 %v64
    %v101 = vunpack.c.l.b16 %v65
    %v102 = vunpack.c.l.b16 %v66
    %v103 = vunpack.c.l.b16 %v67
    %v104 = vunpack.c.l.b16 %v68
    %v105 = vpack.c.b16 %v90, %v89
    %v106 = vpack.c.b16 %v92, %v91
    %v107 = vpack.c.b16 %v94, %v93
    %v108 = vpack.c.b16 %v96, %v95
    %v109 = vpack.c.b16 %v98, %v97
    %v110 = vpack.c.b16 %v100, %v99
    %v111 = vpack.c.b16 %v102, %v101
    %v112 = vpack.c.b16 %v104, %v103
    %121 = vmatpush.bf16.msra.mxu0 %v112
    %122 = vmatpush.bf16.msra.mxu0 %v111
    %123 = vmatpush.bf16.msra.mxu0 %v110
    %124 = vmatpush.bf16.msra.mxu0 %v109
    %125 = vmatpush.bf16.msra.mxu0 %v108
    %126 = vmatpush.bf16.msra.mxu0 %v107
    %127 = vmatpush.bf16.msra.mxu0 %v106
    %128 = vmatpush.bf16.msra.mxu0 %v105
    %129 = vmatmul.bf16.gmra.mxu0 %v52
    %v130 = vpop.f32.mrf.mxu0
    %v131 = vadd.f32 %v71, %v130
    %v132 = vpop.f32.mrf.mxu0
    %133 = vdwg.mxu0
    %v134 = vmax.f32 %v131, 0.0
    %v135 = vpack.c.bf16 %v134, %v134
    %s136 = scalar_lea.vmem [#allocation6], 64
    %v137 = vld [vmem:[%s136] sm:$0xf]
    %v138 = vld [vmem:[%s136 + $0x4] sm:$0xf]
    %v139 = vld [vmem:[%s136 + $0x8] sm:$0xf]
    %v140 = vld [vmem:[%s136 + $0xc] sm:$0xf]
    %v141 = vld [vmem:[%s136 + $0x10] sm:$0xf]
    %v142 = vld [vmem:[%s136 + $0x14] sm:$0xf]
    %v143 = vld [vmem:[%s136 + $0x18] sm:$0xf]
    %v144 = vld [vmem:[%s136 + $0x1c] sm:$0xf]
    %v145 = vld [vmem:[%s136 + $0x20] sm:$0xf]
    %v146 = vld [vmem:[%s136 + $0x24] sm:$0xf]
    %v147 = vld [vmem:[%s136 + $0x28] sm:$0xf]
    %v148 = vld [vmem:[%s136 + $0x2c] sm:$0xf]
    %v149 = vld [vmem:[%s136 + $0x30] sm:$0xf]
    %v150 = vld [vmem:[%s136 + $0x34] sm:$0xf]
    %v151 = vld [vmem:[%s136 + $0x38] sm:$0xf]
    %v152 = vld [vmem:[%s136 + $0x3c] sm:$0xf]
    %s153 = scalar_lea.vmem %s2, 1
    %v154 = vld [vmem:[%s153] sm:$0x1]
    %v156 = vperm.slane %v154, 0
    %v174 = vunpack.c.l.b16 %v137
    %v175 = vunpack.c.l.b16 %v138
    %v176 = vunpack.c.l.b16 %v139
    %v177 = vunpack.c.l.b16 %v140
    %v178 = vunpack.c.l.b16 %v141
    %v179 = vunpack.c.l.b16 %v142
    %v180 = vunpack.c.l.b16 %v143
    %v181 = vunpack.c.l.b16 %v144
    %v182 = vunpack.c.l.b16 %v145
    %v183 = vunpack.c.l.b16 %v146
    %v184 = vunpack.c.l.b16 %v147
    %v185 = vunpack.c.l.b16 %v148
    %v186 = vunpack.c.l.b16 %v149
    %v187 = vunpack.c.l.b16 %v150
    %v188 = vunpack.c.l.b16 %v151
    %v189 = vunpack.c.l.b16 %v152
    %v190 = vpack.c.b16 %v175, %v174
    %v191 = vpack.c.b16 %v177, %v176
    %v192 = vpack.c.b16 %v179, %v178
    %v193 = vpack.c.b16 %v181, %v180
    %v194 = vpack.c.b16 %v183, %v182
    %v195 = vpack.c.b16 %v185, %v184
    %v196 = vpack.c.b16 %v187, %v186
    %v197 = vpack.c.b16 %v189, %v188
    %206 = vmatpush.bf16.msra.mxu0 %v197
    %207 = vmatpush.bf16.msra.mxu0 %v196
    %208 = vmatpush.bf16.msra.mxu0 %v195
    %209 = vmatpush.bf16.msra.mxu0 %v194
    %210 = vmatpush.bf16.msra.mxu0 %v193
    %211 = vmatpush.bf16.msra.mxu0 %v192
    %212 = vmatpush.bf16.msra.mxu0 %v191
    %213 = vmatpush.bf16.msra.mxu0 %v190
    %214 = vmatmul.bf16.gmra.mxu0 %v135
    %v215 = vpop.f32.mrf.mxu0
    %v216 = vadd.f32 %v156, %v215
    %v217 = vpop.f32.mrf.mxu0
    %218 = vdwg.mxu0
    %v219 = vmax.f32 %v216, 0.0
    %v220 = vpack.c.bf16 %v219, %v219
    %v221 = vld [vmem:[%s3] sm:$0x1]
    %v222 = vunpack.c.l.bf16 %v221
    %v223 = vunpack.c.l.bf16 %v220
    %v224 = vperm.slane %v222, 0
    %v225 = vmul.f32 %v223, %v224
    %226 = vadd.xlane.f32.xlu0 %v225
    %v227 = vpop.xlane.xlu0 %226
    %s228 = sld [smem:[#allocation2]]
    %v229 = vstv %s228
    %v230 = vadd.f32 %v227, %v229
    %231 = vst [vmem:[#allocation8] sm:$0xff] %v230
    // Predicated region
    $region30: #{tpu_custom_call.1} parent=1 // pred_check
      _
    $region31: #{tpu_custom_call.1} parent=1 // pred_check_branch
      %233 = sbr.rel (0) target = $region33
    $region32: #{tpu_custom_call.1} parent=1 // pred_region
      %235 = vsyncadd [#allocation5], 0
      %s237 = sshll.u32 [#allocation8], 4
      %s238 = int_to_ptr.vmem [resolvable:$true] %s237
      %s239 = sshll.u32 %s5, 4
      %s240 = int_to_ptr.hbm [resolvable:$true] %s239
      %242 = dma.vmem_to_hbm [thread:$0]  %s238, 128, %s240, [#allocation5]
    $region33: #{tpu_custom_call.1} parent=1 // pred_fallthru
      _
    // Predicated region
    $region34: #{tpu_custom_call.1} parent=1 // pred_check
      _
    $region35: #{tpu_custom_call.1} parent=1 // pred_check_branch
      %244 = sbr.rel (0) target = $region37
    $region36: #{tpu_custom_call.1} parent=1 // pred_region
      %246 = dma.done [#allocation5], 128
    $region37: #{tpu_custom_call.1} parent=1 // pred_fallthru
      _
    %247 = vsyncpa [#allocation4], 1
    %248 = vsyncpa [#allocation7], 1
    %249 = vsyncpa [#allocation5], 1

</llo_original>
